<compile_context>
chip_gen: v7x
topology: tpu7x:2x2x1
jax: 0.10.0
libtpu: 0.0.40
codegen_flags: <defaults>
</compile_context>

<pallas_src>
import functools

import jax
import jax.numpy as jnp
from jax.experimental import pallas as pl
from jax.experimental.pallas import tpu as pltpu

EPS = 1e-5                 # torch.nn.LayerNorm default eps
HID1, HID2 = 256, 128


def _round_up(n, m):
    return ((n + m - 1) // m) * m


def _default_bf16_epilogue():
    """bf16 VALU exists on v6e/v7x; v5e and older have none (bf16 epilogue would add casts)."""
    try:
        kind = jax.devices()[0].device_kind.lower()
    except Exception:
        return False
    return ("v6" in kind) or ("v7" in kind)


def _ln_relu(h, gamma, beta, out_dtype):
    """PyTorch LayerNorm (biased variance, eps inside rsqrt) + ReLU.

    Statistics in f32 on the EUP/XLU; the elementwise epilogue (*gamma, +beta, ReLU) in
    out_dtype (bf16 on v6e/v7x, f32 on v5e). gamma/beta arrive pre-cast to out_dtype.
    """
    mu = jnp.mean(h, axis=-1, keepdims=True)
    ex2 = jnp.mean(h * h, axis=-1, keepdims=True)          # E[h^2] - mu^2: independent reduces
    inv = jax.lax.rsqrt(ex2 - mu * mu + EPS)
    y = ((h - mu) * inv).astype(out_dtype)
    y = y * gamma + beta
    return jnp.maximum(y, 0)


def value_net_kernel(x_ref,
                     w1_ref, b1_ref, g1_ref, be1_ref,
                     w2_ref, b2_ref, g2_ref, be2_ref,
                     w3_ref, b3_ref,
                     o_ref, *, ln_dtype):
    # Layer 1: Linear(in_dim -> 256). Weights already bf16; f32 MXU accumulation.
    # (If exact f32 parity with PyTorch mattered most, this K=16 matmul could run in f32 at
    #  negligible cost since the MXU is idle — bf16 kept for a uniform weight path.)
    x = x_ref[...].astype(jnp.bfloat16)
    h = jnp.dot(x, w1_ref[...], preferred_element_type=jnp.float32) + b1_ref[...]
    h = _ln_relu(h, g1_ref[...], be1_ref[...], ln_dtype)          # [TB, 256]

    # Layer 2: Linear(256 -> 128).
    h = jnp.dot(h.astype(jnp.bfloat16), w2_ref[...],
                preferred_element_type=jnp.float32) + b2_ref[...]
    h = _ln_relu(h, g2_ref[...], be2_ref[...], ln_dtype)          # [TB, 128]

    # Layer 3: Linear(128 -> 1) on the otherwise-idle MXU, stored lane-dense:
    # w3 is a [1, 128] bf16 row, h.T is [128, TB]  ->  [1, TB] row per tile
    # (unmasked vst instead of TB/8 masked column stores).
    hT = h.astype(jnp.bfloat16).T
    o_ref[...] = jnp.dot(w3_ref[...], hT,
                         preferred_element_type=jnp.float32) + b3_ref[...]


def value_network_forward(x, params, *, max_tile=4096, bf16_epilogue=None):
    """x: [B, state_dim+4] (or [state_dim+4]) float32 -> [B, 1] float32."""
    if x.ndim == 1:
        x = x[None, :]                       # mirrors state.unsqueeze(0)
    x = x.astype(jnp.float32)
    B, in_dim = x.shape

    if bf16_epilogue is None:
        bf16_epilogue = _default_bf16_epilogue()
    ln_dtype = jnp.bfloat16 if bf16_epilogue else jnp.float32

    # Batch tile: large (amortizes per-grid-step overhead), but capped so the grid has >= 2
    # steps whenever possible (v7x megacore needs >= 2 steps on the "parallel" axis).
    TB = min(max_tile, _round_up(pl.cdiv(B, 2), 8))
    TB = max(TB, 8)
    grid_b = pl.cdiv(B, TB)
    B_pad = grid_b * TB
    if B_pad != B:
        # Zero-pad the batch so every tile is full; padded rows are row-local garbage that is
        # sliced away below (no cross-row reductions anywhere in this network).
        x = jnp.pad(x, ((0, B_pad - B), (0, 0)))

    # One-time casts outside the kernel: matmul weights -> bf16 MXU inputs, LN affine params
    # -> epilogue dtype. Biases stay f32 (added to f32 accumulators).
    args = {
        "w1": params["w1"].astype(jnp.bfloat16),
        "b1": params["b1"].astype(jnp.float32),
        "g1": params["g1"].astype(ln_dtype),
        "be1": params["be1"].astype(ln_dtype),
        "w2": params["w2"].astype(jnp.bfloat16),
        "b2": params["b2"].astype(jnp.float32),
        "g2": params["g2"].astype(ln_dtype),
        "be2": params["be2"].astype(ln_dtype),
        "w3": params["w3"].astype(jnp.bfloat16),   # [1, 128] row
        "b3": params["b3"].astype(jnp.float32),    # [1, 1]
    }
    order = ("w1", "b1", "g1", "be1", "w2", "b2", "g2", "be2", "w3", "b3")

    x_spec = pl.BlockSpec((TB, in_dim), lambda i: (i, 0))
    # Constant index_maps -> weights stay VMEM-resident, never re-DMAed per grid step.
    resident_specs = [pl.BlockSpec(args[k].shape, lambda i: (0, 0)) for k in order]
    out_spec = pl.BlockSpec((1, TB), lambda i: (i, 0))     # lane-dense output row per tile

    out = pl.pallas_call(
        functools.partial(value_net_kernel, ln_dtype=ln_dtype),
        out_shape=jax.ShapeDtypeStruct((grid_b, TB), jnp.float32),
        grid=(grid_b,),
        in_specs=[x_spec] + resident_specs,
        out_specs=out_spec,
        compiler_params=pltpu.CompilerParams(
            dimension_semantics=("parallel",),
            # Covers TB=4096 comfortably everywhere: raises v5e's 16 MiB scoped default,
            # leaves headroom on v7x's 64 MiB physical VMEM.
            vmem_limit_bytes=32 * 1024 * 1024,
        ),
    )(x, *(args[k] for k in order))

    return out.reshape(-1)[:B, None]                       # [grid_b, TB] -> [B, 1]


def init_params(key, state_dim):
    """Deterministic init mimicking torch.nn.Linear defaults (U(-1/sqrt(fan_in), +))."""
    in_dim = state_dim + 4
    params = {}
    keys = jax.random.split(key, 6)

    def lin(kw, kb, fi, fo):
        bound = 1.0 / jnp.sqrt(fi)
        w = jax.random.uniform(kw, (fi, fo), jnp.float32, -bound, bound)
        b = jax.random.uniform(kb, (1, fo), jnp.float32, -bound, bound)
        return w, b

    params["w1"], params["b1"] = lin(keys[0], keys[1], in_dim, HID1)
    params["w2"], params["b2"] = lin(keys[2], keys[3], HID1, HID2)
    w3, b3 = lin(keys[4], keys[5], HID2, 1)
    params["w3"] = w3.T          # stored as [1, 128] row for the in-kernel MXU dot(w3, h.T)
    params["b3"] = b3            # [1, 1]

    # LayerNorm affine params: torch default ones/zeros (kept 2D for lane layout).
    params["g1"] = jnp.ones((1, HID1), jnp.float32)
    params["be1"] = jnp.zeros((1, HID1), jnp.float32)
    params["g2"] = jnp.ones((1, HID2), jnp.float32)
    params["be2"] = jnp.zeros((1, HID2), jnp.float32)
    return params


def reference_forward(x, p, *, matmul_dtype=jnp.float32, ln_dtype=jnp.float32):
    """Pure-JAX reference. matmul_dtype/ln_dtype=bfloat16 mirror the kernel's casts."""
    if x.ndim == 1:
        x = x[None, :]
    x = x.astype(jnp.float32)

    def mm(a, w):
        return jnp.dot(a.astype(matmul_dtype), w.astype(matmul_dtype),
                       preferred_element_type=jnp.float32)

    def ln_relu(h, g, b):
        mu = jnp.mean(h, axis=-1, keepdims=True)
        var = jnp.mean(h * h, axis=-1, keepdims=True) - mu * mu
        inv = jax.lax.rsqrt(var + EPS)
        y = ((h - mu) * inv).astype(ln_dtype) * g.astype(ln_dtype) + b.astype(ln_dtype)
        return jnp.maximum(y, 0).astype(jnp.float32)

    h = mm(x, p["w1"]) + p["b1"]
    h = ln_relu(h, p["g1"], p["be1"])
    h = mm(h, p["w2"]) + p["b2"]
    h = ln_relu(h, p["g2"], p["be2"])
    return mm(h, p["w3"].T) + p["b3"]      # w3 stored as [1, 128] row


if __name__ == "__main__":
    state_dim = 12                         # network input is state_dim + 4 = 16 features
    batch = 8
    key = jax.random.PRNGKey(0)
    pkey, xkey = jax.random.split(key)
    params = init_params(pkey, state_dim)
    x = jax.random.normal(xkey, (batch, state_dim + 4), jnp.float32)

    use_bf16_epi = _default_bf16_epilogue()
    ln_dtype = jnp.bfloat16 if use_bf16_epi else jnp.float32

    out = jax.block_until_ready(
        value_network_forward(x, params, bf16_epilogue=use_bf16_epi))
    assert out.shape == (batch, 1)

    # Tight check against a reference that mirrors the kernel's bf16 casts.
    ref_mirror = reference_forward(x, params, matmul_dtype=jnp.bfloat16, ln_dtype=ln_dtype)
    assert jnp.allclose(out, ref_mirror, atol=5e-3, rtol=5e-3), \
        float(jnp.max(jnp.abs(out - ref_mirror)))
    # Looser check against the pure-f32 (PyTorch-semantics) reference.
    ref_f32 = reference_forward(x, params)
    assert jnp.allclose(out, ref_f32, atol=1e-1, rtol=1e-1), \
        float(jnp.max(jnp.abs(out - ref_f32)))

    # 1-D state path (mirrors state.unsqueeze(0)); exercises a zero-padded batch tile.
    out_vec = jax.block_until_ready(
        value_network_forward(x[0], params, bf16_epilogue=use_bf16_epi))
    assert out_vec.shape == (1, 1)
    assert jnp.allclose(out_vec, out[0:1], atol=1e-5, rtol=1e-5)

    # Multi-tile + padded-last-tile path (3 grid steps of TB=128; batch padded 300 -> 384).
    x_big = jax.random.normal(jax.random.PRNGKey(1), (300, state_dim + 4), jnp.float32)
    out_big = jax.block_until_ready(
        value_network_forward(x_big, params, max_tile=128, bf16_epilogue=use_bf16_epi))
    assert out_big.shape == (300, 1)
    ref_big = reference_forward(x_big, params, matmul_dtype=jnp.bfloat16, ln_dtype=ln_dtype)
    assert jnp.allclose(out_big, ref_big, atol=5e-3, rtol=5e-3), \
        float(jnp.max(jnp.abs(out_big - ref_big)))

    print("KERNEL_OK")
</pallas_src>

<mosaic_0001>
module attributes {stable_mosaic.version = 11 : i64} {
  func.func @value_net_kernel(%arg0: i32, %arg1: memref<8x16xf32, #tpu.memory_space<vmem>>, %arg2: memref<16x256xbf16, #tpu.memory_space<vmem>>, %arg3: memref<1x256xf32, #tpu.memory_space<vmem>>, %arg4: memref<1x256xf32, #tpu.memory_space<vmem>>, %arg5: memref<1x256xf32, #tpu.memory_space<vmem>>, %arg6: memref<256x128xbf16, #tpu.memory_space<vmem>>, %arg7: memref<1x128xf32, #tpu.memory_space<vmem>>, %arg8: memref<1x128xf32, #tpu.memory_space<vmem>>, %arg9: memref<1x128xf32, #tpu.memory_space<vmem>>, %arg10: memref<1x128xbf16, #tpu.memory_space<vmem>>, %arg11: memref<1x1xf32, #tpu.memory_space<vmem>>, %arg12: memref<1x8xf32, #tpu.memory_space<vmem>>) attributes {dimension_semantics = [#tpu.dimension_semantics<parallel>], iteration_bounds = array<i64: 1>, scalar_prefetch = 0 : i64, scratch_operands = 0 : i64, tpu.core_type = #tpu.core_type<tc>, window_params = [{transform_indices = @transform_0, window_bounds = array<i64: 8, 16>}, {pipeline_mode = #tpu.pipeline_mode<synchronous>, transform_indices = @transform_1, window_bounds = array<i64: 16, 256>}, {pipeline_mode = #tpu.pipeline_mode<synchronous>, transform_indices = @transform_2, window_bounds = array<i64: 1, 256>}, {pipeline_mode = #tpu.pipeline_mode<synchronous>, transform_indices = @transform_3, window_bounds = array<i64: 1, 256>}, {pipeline_mode = #tpu.pipeline_mode<synchronous>, transform_indices = @transform_4, window_bounds = array<i64: 1, 256>}, {pipeline_mode = #tpu.pipeline_mode<synchronous>, transform_indices = @transform_5, window_bounds = array<i64: 256, 128>}, {pipeline_mode = #tpu.pipeline_mode<synchronous>, transform_indices = @transform_6, window_bounds = array<i64: 1, 128>}, {pipeline_mode = #tpu.pipeline_mode<synchronous>, transform_indices = @transform_7, window_bounds = array<i64: 1, 128>}, {pipeline_mode = #tpu.pipeline_mode<synchronous>, transform_indices = @transform_8, window_bounds = array<i64: 1, 128>}, {pipeline_mode = #tpu.pipeline_mode<synchronous>, transform_indices = @transform_9, window_bounds = array<i64: 1, 128>}, {pipeline_mode = #tpu.pipeline_mode<synchronous>, transform_indices = @transform_10, window_bounds = array<i64: 1, 1>}, {transform_indices = @transform_11, window_bounds = array<i64: 1, 8>}]} {
    %c0 = arith.constant 0 : index
    %c0_0 = arith.constant 0 : index
    %0 = vector.load %arg1[%c0, %c0_0] : memref<8x16xf32, #tpu.memory_space<vmem>>, vector<8x16xf32>
    %1 = arith.truncf %0 : vector<8x16xf32> to vector<8x16xbf16>
    %c0_1 = arith.constant 0 : index
    %c0_2 = arith.constant 0 : index
    %2 = vector.load %arg2[%c0_1, %c0_2] : memref<16x256xbf16, #tpu.memory_space<vmem>>, vector<16x256xbf16>
    %cst = arith.constant dense<0.000000e+00> : vector<8x256xf32>
    %3 = tpu.matmul %1, %2, %cst {dimension_numbers = #tpu.dot_dimension_numbers<[1], [0], [0], [1], [0, 0, 1, 1], [], []>} : vector<8x16xbf16>, vector<16x256xbf16>, vector<8x256xf32> -> vector<8x256xf32>
    %c0_3 = arith.constant 0 : index
    %c0_4 = arith.constant 0 : index
    %4 = vector.load %arg3[%c0_3, %c0_4] : memref<1x256xf32, #tpu.memory_space<vmem>>, vector<1x256xf32>
    %5 = vector.broadcast %4 : vector<1x256xf32> to vector<8x256xf32>
    %6 = arith.addf %3, %5 : vector<8x256xf32>
    %c0_5 = arith.constant 0 : index
    %c0_6 = arith.constant 0 : index
    %7 = vector.load %arg4[%c0_5, %c0_6] : memref<1x256xf32, #tpu.memory_space<vmem>>, vector<1x256xf32>
    %c0_7 = arith.constant 0 : index
    %c0_8 = arith.constant 0 : index
    %8 = vector.load %arg5[%c0_7, %c0_8] : memref<1x256xf32, #tpu.memory_space<vmem>>, vector<1x256xf32>
    %cst_9 = arith.constant dense<0.000000e+00> : vector<8xf32>
    %9 = vector.multi_reduction <add>, %6, %cst_9 [1] : vector<8x256xf32> to vector<8xf32>
    %10 = vector.shape_cast %9 : vector<8xf32> to vector<8x1xf32>
    %cst_10 = arith.constant 2.560000e+02 : f32
    %11 = vector.broadcast %cst_10 : f32 to vector<8x1xf32>
    %12 = arith.divf %10, %11 : vector<8x1xf32>
    %13 = arith.mulf %6, %6 : vector<8x256xf32>
    %cst_11 = arith.constant dense<0.000000e+00> : vector<8xf32>
    %14 = vector.multi_reduction <add>, %13, %cst_11 [1] : vector<8x256xf32> to vector<8xf32>
    %15 = vector.shape_cast %14 : vector<8xf32> to vector<8x1xf32>
    %cst_12 = arith.constant 2.560000e+02 : f32
    %16 = vector.broadcast %cst_12 : f32 to vector<8x1xf32>
    %17 = arith.divf %15, %16 : vector<8x1xf32>
    %18 = arith.mulf %12, %12 : vector<8x1xf32>
    %19 = arith.subf %17, %18 : vector<8x1xf32>
    %cst_13 = arith.constant 9.99999974E-6 : f32
    %20 = vector.broadcast %cst_13 : f32 to vector<8x1xf32>
    %21 = arith.addf %19, %20 : vector<8x1xf32>
    %22 = math.rsqrt %21 : vector<8x1xf32>
    %23 = vector.broadcast %12 : vector<8x1xf32> to vector<8x256xf32>
    %24 = arith.subf %6, %23 : vector<8x256xf32>
    %25 = vector.broadcast %22 : vector<8x1xf32> to vector<8x256xf32>
    %26 = arith.mulf %24, %25 : vector<8x256xf32>
    %27 = vector.broadcast %7 : vector<1x256xf32> to vector<8x256xf32>
    %28 = arith.mulf %26, %27 : vector<8x256xf32>
    %29 = vector.broadcast %8 : vector<1x256xf32> to vector<8x256xf32>
    %30 = arith.addf %28, %29 : vector<8x256xf32>
    %cst_14 = arith.constant 0.000000e+00 : f32
    %31 = vector.broadcast %cst_14 : f32 to vector<8x256xf32>
    %32 = arith.maximumf %30, %31 : vector<8x256xf32>
    %33 = arith.truncf %32 : vector<8x256xf32> to vector<8x256xbf16>
    %c0_15 = arith.constant 0 : index
    %c0_16 = arith.constant 0 : index
    %34 = vector.load %arg6[%c0_15, %c0_16] : memref<256x128xbf16, #tpu.memory_space<vmem>>, vector<256x128xbf16>
    %cst_17 = arith.constant dense<0.000000e+00> : vector<8x128xf32>
    %35 = tpu.matmul %33, %34, %cst_17 {dimension_numbers = #tpu.dot_dimension_numbers<[1], [0], [0], [1], [0, 0, 1, 1], [], []>} : vector<8x256xbf16>, vector<256x128xbf16>, vector<8x128xf32> -> vector<8x128xf32>
    %c0_18 = arith.constant 0 : index
    %c0_19 = arith.constant 0 : index
    %36 = vector.load %arg7[%c0_18, %c0_19] : memref<1x128xf32, #tpu.memory_space<vmem>>, vector<1x128xf32>
    %37 = vector.broadcast %36 : vector<1x128xf32> to vector<8x128xf32>
    %38 = arith.addf %35, %37 : vector<8x128xf32>
    %c0_20 = arith.constant 0 : index
    %c0_21 = arith.constant 0 : index
    %39 = vector.load %arg8[%c0_20, %c0_21] : memref<1x128xf32, #tpu.memory_space<vmem>>, vector<1x128xf32>
    %c0_22 = arith.constant 0 : index
    %c0_23 = arith.constant 0 : index
    %40 = vector.load %arg9[%c0_22, %c0_23] : memref<1x128xf32, #tpu.memory_space<vmem>>, vector<1x128xf32>
    %cst_24 = arith.constant dense<0.000000e+00> : vector<8xf32>
    %41 = vector.multi_reduction <add>, %38, %cst_24 [1] : vector<8x128xf32> to vector<8xf32>
    %42 = vector.shape_cast %41 : vector<8xf32> to vector<8x1xf32>
    %cst_25 = arith.constant 1.280000e+02 : f32
    %43 = vector.broadcast %cst_25 : f32 to vector<8x1xf32>
    %44 = arith.divf %42, %43 : vector<8x1xf32>
    %45 = arith.mulf %38, %38 : vector<8x128xf32>
    %cst_26 = arith.constant dense<0.000000e+00> : vector<8xf32>
    %46 = vector.multi_reduction <add>, %45, %cst_26 [1] : vector<8x128xf32> to vector<8xf32>
    %47 = vector.shape_cast %46 : vector<8xf32> to vector<8x1xf32>
    %cst_27 = arith.constant 1.280000e+02 : f32
    %48 = vector.broadcast %cst_27 : f32 to vector<8x1xf32>
    %49 = arith.divf %47, %48 : vector<8x1xf32>
    %50 = arith.mulf %44, %44 : vector<8x1xf32>
    %51 = arith.subf %49, %50 : vector<8x1xf32>
    %cst_28 = arith.constant 9.99999974E-6 : f32
    %52 = vector.broadcast %cst_28 : f32 to vector<8x1xf32>
    %53 = arith.addf %51, %52 : vector<8x1xf32>
    %54 = math.rsqrt %53 : vector<8x1xf32>
    %55 = vector.broadcast %44 : vector<8x1xf32> to vector<8x128xf32>
    %56 = arith.subf %38, %55 : vector<8x128xf32>
    %57 = vector.broadcast %54 : vector<8x1xf32> to vector<8x128xf32>
    %58 = arith.mulf %56, %57 : vector<8x128xf32>
    %59 = vector.broadcast %39 : vector<1x128xf32> to vector<8x128xf32>
    %60 = arith.mulf %58, %59 : vector<8x128xf32>
    %61 = vector.broadcast %40 : vector<1x128xf32> to vector<8x128xf32>
    %62 = arith.addf %60, %61 : vector<8x128xf32>
    %cst_29 = arith.constant 0.000000e+00 : f32
    %63 = vector.broadcast %cst_29 : f32 to vector<8x128xf32>
    %64 = arith.maximumf %62, %63 : vector<8x128xf32>
    %65 = arith.truncf %64 : vector<8x128xf32> to vector<8x128xbf16>
    %66 = tpu.transpose %65, [1, 0] : vector<8x128xbf16> -> vector<128x8xbf16>
    %c0_30 = arith.constant 0 : index
    %c0_31 = arith.constant 0 : index
    %67 = vector.load %arg10[%c0_30, %c0_31] : memref<1x128xbf16, #tpu.memory_space<vmem>>, vector<1x128xbf16>
    %cst_32 = arith.constant dense<0.000000e+00> : vector<1x8xf32>
    %68 = tpu.matmul %67, %66, %cst_32 {dimension_numbers = #tpu.dot_dimension_numbers<[1], [0], [0], [1], [0, 0, 1, 1], [], []>} : vector<1x128xbf16>, vector<128x8xbf16>, vector<1x8xf32> -> vector<1x8xf32>
    %c0_33 = arith.constant 0 : index
    %c0_34 = arith.constant 0 : index
    %69 = vector.load %arg11[%c0_33, %c0_34] : memref<1x1xf32, #tpu.memory_space<vmem>>, vector<1x1xf32>
    %70 = vector.broadcast %69 : vector<1x1xf32> to vector<1x8xf32>
    %71 = arith.addf %68, %70 : vector<1x8xf32>
    %c0_35 = arith.constant 0 : index
    %c0_36 = arith.constant 0 : index
    %72 = vector.load %arg12[%c0_35, %c0_36] : memref<1x8xf32, #tpu.memory_space<vmem>>, vector<1x8xf32>
    tpu.vector_store %arg12[%c0_35, %c0_36], %71 {strides = array<i32>} : memref<1x8xf32, #tpu.memory_space<vmem>>, vector<1x8xf32>,
    return
  }
  func.func @transform_0(%arg0: i32) -> (i32, i32) {
    %c0_i32 = arith.constant 0 : i32
    %c0_i32_0 = arith.constant 0 : i32
    return %arg0, %c0_i32 : i32, i32
  }
  func.func @transform_1(%arg0: i32) -> (i32, i32) {
    %c0_i32 = arith.constant 0 : i32
    %c0_i32_0 = arith.constant 0 : i32
    %c0_i32_1 = arith.constant 0 : i32
    return %c0_i32, %c0_i32_0 : i32, i32
  }
  func.func @transform_2(%arg0: i32) -> (i32, i32) {
    %c0_i32 = arith.constant 0 : i32
    %c0_i32_0 = arith.constant 0 : i32
    %c0_i32_1 = arith.constant 0 : i32
    return %c0_i32, %c0_i32_0 : i32, i32
  }
  func.func @transform_3(%arg0: i32) -> (i32, i32) {
    %c0_i32 = arith.constant 0 : i32
    %c0_i32_0 = arith.constant 0 : i32
    %c0_i32_1 = arith.constant 0 : i32
    return %c0_i32, %c0_i32_0 : i32, i32
  }
  func.func @transform_4(%arg0: i32) -> (i32, i32) {
    %c0_i32 = arith.constant 0 : i32
    %c0_i32_0 = arith.constant 0 : i32
    %c0_i32_1 = arith.constant 0 : i32
    return %c0_i32, %c0_i32_0 : i32, i32
  }
  func.func @transform_5(%arg0: i32) -> (i32, i32) {
    %c0_i32 = arith.constant 0 : i32
    %c0_i32_0 = arith.constant 0 : i32
    %c0_i32_1 = arith.constant 0 : i32
    return %c0_i32, %c0_i32_0 : i32, i32
  }
  func.func @transform_6(%arg0: i32) -> (i32, i32) {
    %c0_i32 = arith.constant 0 : i32
    %c0_i32_0 = arith.constant 0 : i32
    %c0_i32_1 = arith.constant 0 : i32
    return %c0_i32, %c0_i32_0 : i32, i32
  }
  func.func @transform_7(%arg0: i32) -> (i32, i32) {
    %c0_i32 = arith.constant 0 : i32
    %c0_i32_0 = arith.constant 0 : i32
    %c0_i32_1 = arith.constant 0 : i32
    return %c0_i32, %c0_i32_0 : i32, i32
  }
  func.func @transform_8(%arg0: i32) -> (i32, i32) {
    %c0_i32 = arith.constant 0 : i32
    %c0_i32_0 = arith.constant 0 : i32
    %c0_i32_1 = arith.constant 0 : i32
    return %c0_i32, %c0_i32_0 : i32, i32
  }
  func.func @transform_9(%arg0: i32) -> (i32, i32) {
    %c0_i32 = arith.constant 0 : i32
    %c0_i32_0 = arith.constant 0 : i32
    %c0_i32_1 = arith.constant 0 : i32
    return %c0_i32, %c0_i32_0 : i32, i32
  }
  func.func @transform_10(%arg0: i32) -> (i32, i32) {
    %c0_i32 = arith.constant 0 : i32
    %c0_i32_0 = arith.constant 0 : i32
    %c0_i32_1 = arith.constant 0 : i32
    return %c0_i32, %c0_i32_0 : i32, i32
  }
  func.func @transform_11(%arg0: i32) -> (i32, i32) {
    %c0_i32 = arith.constant 0 : i32
    %c0_i32_0 = arith.constant 0 : i32
    return %arg0, %c0_i32 : i32, i32
  }
}

</mosaic_0001>

<llo_original>
// kernel: tpu_custom_call.1
$region0: #{tpu_custom_call.1}
  #allocation0 [shape = 'u32[]', space=smem, size = 0x4, offset = 0x4, fixed_abs, tag = 'smem constant byte address 0x4 - core index']
  #allocation1 [shape = 'u32[144,128]{1,0:T(1,128)}', space=vmem, size = 0x12000, scoped, tag = 'internal scratch']
  #allocation2 [shape = 'f32[1,1]{1,0:T(1,128)S(1)}', space=vmem, size = 0x200, scoped, tag = 'scoped memory for tpu_custom_call.1']
  %s0 = inlined_call_operand.hbm [shape: f32[8,16], index: 0, kind: input, shape index: {}]
  %s1 = inlined_call_operand.hbm [shape: bf16[16,256], index: 1, kind: input, shape index: {}]
  %s2 = inlined_call_operand.vmem [shape: f32[1,256], index: 2, kind: input, shape index: {}]
  %s3 = inlined_call_operand.vmem [shape: f32[1,256], index: 3, kind: input, shape index: {}]
  %s4 = inlined_call_operand.vmem [shape: f32[1,256], index: 4, kind: input, shape index: {}]
  %s5 = inlined_call_operand.hbm [shape: bf16[256,128], index: 5, kind: input, shape index: {}]
  %s6 = inlined_call_operand.vmem [shape: f32[1,128], index: 6, kind: input, shape index: {}]
  %s7 = inlined_call_operand.vmem [shape: f32[1,128], index: 7, kind: input, shape index: {}]
  %s8 = inlined_call_operand.vmem [shape: f32[1,128], index: 8, kind: input, shape index: {}]
  %s9 = inlined_call_operand.vmem [shape: bf16[1,128], index: 9, kind: input, shape index: {}]
  %s10 = inlined_call_operand.<no memory space> [shape: f32[1,1], index: 10, kind: input, shape index: {}]
  %s11 = inlined_call_operand.hbm [shape: f32[1,8], index: 11, kind: output, shape index: {}]
  %s12 = sld [smem:[#allocation0]]
  $region66: #{tpu_custom_call.1} parent=0
    _
  %s14 = ssub.s32 1, %s12
  %s15 = scalar_select 0, %s14, %s12
  %v16 = vstv %s10
  %17 = vst [vmem:[#allocation2] sm:$0x1] %v16
  $region1: #{tpu_custom_call.1} parent=0
    #allocation3 [shape = 'u8[4096]{0}', space=vmem, size = 0x1000, scoped, tag = 'input window, operand 0, single buffered']
    #allocation4 [shape = 's32[1]{0}', space=sflag, size = 0x4, scoped, tag = 'scoped memory for tpu_custom_call.1']
    #allocation5 [shape = 's32[1]{0}', space=sflag, size = 0x4, scoped, tag = 'scoped memory for tpu_custom_call.1']
    #allocation6 [shape = 'u8[8192]{0}', space=vmem, size = 0x2000, scoped, tag = 'input window, operand 1, single buffered']
    #allocation7 [shape = 's32[1]{0}', space=sflag, size = 0x4, scoped, tag = 'scoped memory for tpu_custom_call.1']
    #allocation8 [shape = 'u8[65536]{0}', space=vmem, size = 0x10000, scoped, tag = 'input window, operand 5, single buffered']
    #allocation9 [shape = 'u8[512]{0}', space=vmem, size = 0x400, scoped, tag = 'output window, operand 0, single buffered']
    %18 = vsyncpa [#allocation4], 0
    %19 = vsyncpa [#allocation7], 0
    %20 = vsyncpa [#allocation5], 0
    // Predicated region
    $region2: #{tpu_custom_call.1} parent=1 // pred_check
      _
    $region3: #{tpu_custom_call.1} parent=1 // pred_check_branch
      %22 = sbr.rel (0) target = $region5
    $region4: #{tpu_custom_call.1} parent=1 // pred_region
      %s24 = ssub.s32 128, 128
      %25 = vsyncadd [#allocation4], %s24
      %s27 = sshll.u32 [#allocation3], 4
      %s28 = int_to_ptr.vmem [resolvable:$true] %s27
      %30 = dma.hbm_to_vmem [thread:$0]  %s0, 128, %s28, [#allocation4]
    $region5: #{tpu_custom_call.1} parent=1 // pred_fallthru
      _
    // Predicated region
    $region6: #{tpu_custom_call.1} parent=1 // pred_check
      _
    $region7: #{tpu_custom_call.1} parent=1 // pred_check_branch
      %32 = sbr.rel (0) target = $region9
    $region8: #{tpu_custom_call.1} parent=1 // pred_region
      %s34 = ssub.s32 256, 256
      %35 = vsyncadd [#allocation7], %s34
      %s36 = sshll.u32 [#allocation6], 4
      %s37 = int_to_ptr.vmem [resolvable:$true] %s36
      %42 = dma.hbm_to_vmem [thread:$0]  %s1, 256, %s37, [#allocation7], 128, 128, 8
    $region9: #{tpu_custom_call.1} parent=1 // pred_fallthru
      _
    // Predicated region
    $region10: #{tpu_custom_call.1} parent=1 // pred_check
      _
    $region11: #{tpu_custom_call.1} parent=1 // pred_check_branch
      %44 = sbr.rel (0) target = $region13
    $region12: #{tpu_custom_call.1} parent=1 // pred_region
      _
    $region13: #{tpu_custom_call.1} parent=1 // pred_fallthru
      _
    // Predicated region
    $region14: #{tpu_custom_call.1} parent=1 // pred_check
      _
    $region15: #{tpu_custom_call.1} parent=1 // pred_check_branch
      %46 = sbr.rel (0) target = $region17
    $region16: #{tpu_custom_call.1} parent=1 // pred_region
      _
    $region17: #{tpu_custom_call.1} parent=1 // pred_fallthru
      _
    // Predicated region
    $region18: #{tpu_custom_call.1} parent=1 // pred_check
      _
    $region19: #{tpu_custom_call.1} parent=1 // pred_check_branch
      %48 = sbr.rel (0) target = $region21
    $region20: #{tpu_custom_call.1} parent=1 // pred_region
      _
    $region21: #{tpu_custom_call.1} parent=1 // pred_fallthru
      _
    // Predicated region
    $region22: #{tpu_custom_call.1} parent=1 // pred_check
      _
    $region23: #{tpu_custom_call.1} parent=1 // pred_check_branch
      %50 = sbr.rel (0) target = $region25
    $region24: #{tpu_custom_call.1} parent=1 // pred_region
      %s52 = ssub.s32 2048, 2048
      %53 = vsyncadd [#allocation7], %s52
      %s54 = sshll.u32 [#allocation8], 4
      %s55 = int_to_ptr.vmem [resolvable:$true] %s54
      %60 = dma.hbm_to_vmem [thread:$0]  %s5, 2048, %s55, [#allocation7], 64, 64, 4
    $region25: #{tpu_custom_call.1} parent=1 // pred_fallthru
      _
    // Predicated region
    $region26: #{tpu_custom_call.1} parent=1 // pred_check
      _
    $region27: #{tpu_custom_call.1} parent=1 // pred_check_branch
      %62 = sbr.rel (0) target = $region29
    $region28: #{tpu_custom_call.1} parent=1 // pred_region
      _
    $region29: #{tpu_custom_call.1} parent=1 // pred_fallthru
      _
    // Predicated region
    $region30: #{tpu_custom_call.1} parent=1 // pred_check
      _
    $region31: #{tpu_custom_call.1} parent=1 // pred_check_branch
      %64 = sbr.rel (0) target = $region33
    $region32: #{tpu_custom_call.1} parent=1 // pred_region
      _
    $region33: #{tpu_custom_call.1} parent=1 // pred_fallthru
      _
    // Predicated region
    $region34: #{tpu_custom_call.1} parent=1 // pred_check
      _
    $region35: #{tpu_custom_call.1} parent=1 // pred_check_branch
      %66 = sbr.rel (0) target = $region37
    $region36: #{tpu_custom_call.1} parent=1 // pred_region
      _
    $region37: #{tpu_custom_call.1} parent=1 // pred_fallthru
      _
    // Predicated region
    $region38: #{tpu_custom_call.1} parent=1 // pred_check
      _
    $region39: #{tpu_custom_call.1} parent=1 // pred_check_branch
      %68 = sbr.rel (0) target = $region41
    $region40: #{tpu_custom_call.1} parent=1 // pred_region
      _
    $region41: #{tpu_custom_call.1} parent=1 // pred_fallthru
      _
    // Predicated region
    $region42: #{tpu_custom_call.1} parent=1 // pred_check
      _
    $region43: #{tpu_custom_call.1} parent=1 // pred_check_branch
      %70 = sbr.rel (0) target = $region45
    $region44: #{tpu_custom_call.1} parent=1 // pred_region
      _
    $region45: #{tpu_custom_call.1} parent=1 // pred_fallthru
      _
    // Predicated region
    $region46: #{tpu_custom_call.1} parent=1 // pred_check
      _
    $region47: #{tpu_custom_call.1} parent=1 // pred_check_branch
      %72 = sbr.rel (0) target = $region49
    $region48: #{tpu_custom_call.1} parent=1 // pred_region
      %73 = dma.done [#allocation4], 128
    $region49: #{tpu_custom_call.1} parent=1 // pred_fallthru
      _
    // Predicated region
    $region50: #{tpu_custom_call.1} parent=1 // pred_check
      _
    $region51: #{tpu_custom_call.1} parent=1 // pred_check_branch
      %75 = sbr.rel (0) target = $region53
    $region52: #{tpu_custom_call.1} parent=1 // pred_region
      %76 = dma.done [#allocation7], 256
    $region53: #{tpu_custom_call.1} parent=1 // pred_fallthru
      _
    // Predicated region
    $region54: #{tpu_custom_call.1} parent=1 // pred_check
      _
    $region55: #{tpu_custom_call.1} parent=1 // pred_check_branch
      %78 = sbr.rel (0) target = $region57
    $region56: #{tpu_custom_call.1} parent=1 // pred_region
      %79 = dma.done [#allocation7], 2048
    $region57: #{tpu_custom_call.1} parent=1 // pred_fallthru
      _
    %v81 = vld [vmem:[#allocation3] sm:$0xff]
    %v82 = vpack.c.bf16 %v81, %v81
    %v83 = vld [vmem:[#allocation6] sm:$0xff]
    %v84 = vld [vmem:[#allocation6 + $0x8] sm:$0xff]
    %v85 = vld [vmem:[%s2] sm:$0x3]
    %v87 = vlaneseq
    %v88 = vshrl.u32 %v87, 7
    %v89 = vsub.s32 0, %v88
    %v90 = vrot.slane %v85, %v89
    %v91 = vlaneseq
    %v92 = vshrl.u32 %v91, 7
    %v93 = vsub.s32 1, %v92
    %v94 = vrot.slane %v85, %v93
    %v99 = vunpack.c.l.b16 %v83
    %v100 = vunpack.c.h.b16 %v83
    %v101 = vunpack.c.l.b16 %v84
    %v102 = vunpack.c.h.b16 %v84
    %v103 = vpack.c.b16 %v101, %v99
    %v104 = vpack.c.b16 %v102, %v100
    %vm107 = vcmask 130048
    %v109 = vsel %vm107, %v82, 0
    %111 = vmatprep.subr.bf16.mxu0 %v104
    %112 = vmatpush1.bf16.msra.mxu0 %v103
    %113 = vmatprep.subr.bf16.mxu0 0
    %114 = vmatpush1.bf16.msra.mxu0 0
    %115 = vmatprep.subr.bf16.mxu0 0
    %116 = vmatpush1.bf16.msra.mxu0 0
    %117 = vmatprep.subr.bf16.mxu0 0
    %118 = vmatpush1.bf16.msra.mxu0 0
    %119 = vmatprep.subr.bf16.mxu0 0
    %120 = vmatpush1.bf16.msra.mxu0 0
    %121 = vmatprep.subr.bf16.mxu0 0
    %122 = vmatpush1.bf16.msra.mxu0 0
    %123 = vmatprep.subr.bf16.mxu0 0
    %124 = vmatpush1.bf16.msra.mxu0 0
    %125 = vmatprep.subr.bf16.mxu0 0
    %126 = vmatpush1.bf16.msra.mxu0 0
    %127 = vmatprep.subr.bf16.mxu0 0
    %128 = vmatpush1.bf16.msra.mxu0 0
    %129 = vmatprep.subr.bf16.mxu0 0
    %130 = vmatpush1.bf16.msra.mxu0 0
    %131 = vmatprep.subr.bf16.mxu0 0
    %132 = vmatpush1.bf16.msra.mxu0 0
    %133 = vmatprep.subr.bf16.mxu0 0
    %134 = vmatpush1.bf16.msra.mxu0 0
    %135 = vmatprep.subr.bf16.mxu0 0
    %136 = vmatpush1.bf16.msra.mxu0 0
    %137 = vmatprep.subr.bf16.mxu0 0
    %138 = vmatpush1.bf16.msra.mxu0 0
    %139 = vmatprep.subr.bf16.mxu0 0
    %140 = vmatpush1.bf16.msra.mxu0 0
    %141 = vmatprep.subr.bf16.mxu0 0
    %142 = vmatpush1.bf16.msra.mxu0 0
    %143 = vmatprep.mubr.bf16.mxu0 0
    %144 = vmatmul.mubr.bf16.gmra.mrb[0].mxu0 %v109
    %v145 = vpop.f32.mrb[0].mxu0
    %v146 = vadd.f32 %v90, %v145
    %v147 = vpop.f32.mrb[0].mxu0
    %v148 = vadd.f32 %v94, %v147
    %v149 = vpop.f32.mrb[0].mxu0
    %v150 = vpop.f32.mrb[0].mxu0
    %151 = vdwg.mxu0
    %v152 = vld [vmem:[%s3] sm:$0x3]
    %v153 = vld [vmem:[%s4] sm:$0x3]
    %v154 = vadd.f32 %v146, %v148
    %155 = vadd.xlane.f32.xlu0 %v154
    %v156 = vpop.xlane.xlu0 %155
    %v157 = vrcp.pop 256.0
    %v158 = vmul.f32 %v156, %v157
    %v159 = vmul.f32 %v146, %v146
    %v160 = vmul.f32 %v148, %v148
    %v161 = vadd.f32 %v159, %v160
    %162 = vadd.xlane.f32.xlu0 %v161
    %v163 = vpop.xlane.xlu0 %162
    %v164 = vmul.f32 %v163, %v157
    %v165 = vmul.f32 %v158, %v158
    %v166 = vsub.f32 %v164, %v165
    %v167 = vadd.f32 %v166, 1e-05
    %v168 = vrsqrt.pop %v167
    %v169 = vsub.f32 %v146, %v158
    %v170 = vsub.f32 %v148, %v158
    %v171 = vmul.f32 %v169, %v168
    %v172 = vmul.f32 %v170, %v168
    %v174 = vlaneseq
    %v175 = vshrl.u32 %v174, 7
    %v176 = vsub.s32 0, %v175
    %v177 = vrot.slane %v152, %v176
    %v178 = vlaneseq
    %v179 = vshrl.u32 %v178, 7
    %v180 = vsub.s32 1, %v179
    %v181 = vrot.slane %v152, %v180
    %v184 = vmul.f32 %v171, %v177
    %v185 = vmul.f32 %v172, %v181
    %v187 = vlaneseq
    %v188 = vshrl.u32 %v187, 7
    %v189 = vsub.s32 0, %v188
    %v190 = vrot.slane %v153, %v189
    %v191 = vlaneseq
    %v192 = vshrl.u32 %v191, 7
    %v193 = vsub.s32 1, %v192
    %v194 = vrot.slane %v153, %v193
    %v197 = vadd.f32 %v184, %v190
    %v198 = vadd.f32 %v185, %v194
    %v199 = vmax.f32 %v197, 0.0
    %v200 = vmax.f32 %v198, 0.0
    %v201 = vpack.c.bf16 %v199, %v199
    %v202 = vpack.c.bf16 %v200, %v200
    %v203 = vld [vmem:[#allocation8] sm:$0xf]
    %v204 = vld [vmem:[#allocation8 + $0x4] sm:$0xf]
    %v205 = vld [vmem:[#allocation8 + $0x8] sm:$0xf]
    %v206 = vld [vmem:[#allocation8 + $0xc] sm:$0xf]
    %v207 = vld [vmem:[#allocation8 + $0x10] sm:$0xf]
    %v208 = vld [vmem:[#allocation8 + $0x14] sm:$0xf]
    %v209 = vld [vmem:[#allocation8 + $0x18] sm:$0xf]
    %v210 = vld [vmem:[#allocation8 + $0x1c] sm:$0xf]
    %v211 = vld [vmem:[#allocation8 + $0x20] sm:$0xf]
    %v212 = vld [vmem:[#allocation8 + $0x24] sm:$0xf]
    %v213 = vld [vmem:[#allocation8 + $0x28] sm:$0xf]
    %v214 = vld [vmem:[#allocation8 + $0x2c] sm:$0xf]
    %v215 = vld [vmem:[#allocation8 + $0x30] sm:$0xf]
    %v216 = vld [vmem:[#allocation8 + $0x34] sm:$0xf]
    %v217 = vld [vmem:[#allocation8 + $0x38] sm:$0xf]
    %v218 = vld [vmem:[#allocation8 + $0x3c] sm:$0xf]
    %v219 = vld [vmem:[#allocation8 + $0x40] sm:$0xf]
    %v220 = vld [vmem:[#allocation8 + $0x44] sm:$0xf]
    %v221 = vld [vmem:[#allocation8 + $0x48] sm:$0xf]
    %v222 = vld [vmem:[#allocation8 + $0x4c] sm:$0xf]
    %v223 = vld [vmem:[#allocation8 + $0x50] sm:$0xf]
    %v224 = vld [vmem:[#allocation8 + $0x54] sm:$0xf]
    %v225 = vld [vmem:[#allocation8 + $0x58] sm:$0xf]
    %v226 = vld [vmem:[#allocation8 + $0x5c] sm:$0xf]
    %v227 = vld [vmem:[#allocation8 + $0x60] sm:$0xf]
    %v228 = vld [vmem:[#allocation8 + $0x64] sm:$0xf]
    %v229 = vld [vmem:[#allocation8 + $0x68] sm:$0xf]
    %v230 = vld [vmem:[#allocation8 + $0x6c] sm:$0xf]
    %v231 = vld [vmem:[#allocation8 + $0x70] sm:$0xf]
    %v232 = vld [vmem:[#allocation8 + $0x74] sm:$0xf]
    %v233 = vld [vmem:[#allocation8 + $0x78] sm:$0xf]
    %v234 = vld [vmem:[#allocation8 + $0x7c] sm:$0xf]
    %v235 = vld [vmem:[%s6] sm:$0x1]
    %v237 = vlaneseq
    %v238 = vshrl.u32 %v237, 7
    %v239 = vsub.s32 0, %v238
    %v240 = vrot.slane %v235, %v239
    %v274 = vunpack.c.l.b16 %v203
    %v275 = vunpack.c.l.b16 %v204
    %v276 = vunpack.c.l.b16 %v205
    %v277 = vunpack.c.l.b16 %v206
    %v278 = vunpack.c.l.b16 %v207
    %v279 = vunpack.c.l.b16 %v208
    %v280 = vunpack.c.l.b16 %v209
    %v281 = vunpack.c.l.b16 %v210
    %v282 = vunpack.c.l.b16 %v211
    %v283 = vunpack.c.l.b16 %v212
    %v284 = vunpack.c.l.b16 %v213
    %v285 = vunpack.c.l.b16 %v214
    %v286 = vunpack.c.l.b16 %v215
    %v287 = vunpack.c.l.b16 %v216
    %v288 = vunpack.c.l.b16 %v217
    %v289 = vunpack.c.l.b16 %v218
    %v290 = vunpack.c.l.b16 %v219
    %v291 = vunpack.c.l.b16 %v220
    %v292 = vunpack.c.l.b16 %v221
    %v293 = vunpack.c.l.b16 %v222
    %v294 = vunpack.c.l.b16 %v223
    %v295 = vunpack.c.l.b16 %v224
    %v296 = vunpack.c.l.b16 %v225
    %v297 = vunpack.c.l.b16 %v226
    %v298 = vunpack.c.l.b16 %v227
    %v299 = vunpack.c.l.b16 %v228
    %v300 = vunpack.c.l.b16 %v229
    %v301 = vunpack.c.l.b16 %v230
    %v302 = vunpack.c.l.b16 %v231
    %v303 = vunpack.c.l.b16 %v232
    %v304 = vunpack.c.l.b16 %v233
    %v305 = vunpack.c.l.b16 %v234
    %v306 = vpack.c.b16 %v275, %v274
    %v307 = vpack.c.b16 %v277, %v276
    %v308 = vpack.c.b16 %v279, %v278
    %v309 = vpack.c.b16 %v281, %v280
    %v310 = vpack.c.b16 %v283, %v282
    %v311 = vpack.c.b16 %v285, %v284
    %v312 = vpack.c.b16 %v287, %v286
    %v313 = vpack.c.b16 %v289, %v288
    %v314 = vpack.c.b16 %v291, %v290
    %v315 = vpack.c.b16 %v293, %v292
    %v316 = vpack.c.b16 %v295, %v294
    %v317 = vpack.c.b16 %v297, %v296
    %v318 = vpack.c.b16 %v299, %v298
    %v319 = vpack.c.b16 %v301, %v300
    %v320 = vpack.c.b16 %v303, %v302
    %v321 = vpack.c.b16 %v305, %v304
    %338 = vmatprep.subr.bf16.mxu0 0
    %339 = vmatpush1.bf16.msra.mxu0 %v306
    %340 = vmatprep.subr.bf16.mxu0 0
    %341 = vmatpush1.bf16.msra.mxu0 %v307
    %342 = vmatprep.subr.bf16.mxu0 0
    %343 = vmatpush1.bf16.msra.mxu0 %v308
    %344 = vmatprep.subr.bf16.mxu0 0
    %345 = vmatpush1.bf16.msra.mxu0 %v309
    %346 = vmatprep.subr.bf16.mxu0 0
    %347 = vmatpush1.bf16.msra.mxu0 %v310
    %348 = vmatprep.subr.bf16.mxu0 0
    %349 = vmatpush1.bf16.msra.mxu0 %v311
    %350 = vmatprep.subr.bf16.mxu0 0
    %351 = vmatpush1.bf16.msra.mxu0 %v312
    %352 = vmatprep.subr.bf16.mxu0 0
    %353 = vmatpush1.bf16.msra.mxu0 %v313
    %354 = vmatprep.subr.bf16.mxu0 0
    %355 = vmatpush1.bf16.msra.mxu0 %v314
    %356 = vmatprep.subr.bf16.mxu0 0
    %357 = vmatpush1.bf16.msra.mxu0 %v315
    %358 = vmatprep.subr.bf16.mxu0 0
    %359 = vmatpush1.bf16.msra.mxu0 %v316
    %360 = vmatprep.subr.bf16.mxu0 0
    %361 = vmatpush1.bf16.msra.mxu0 %v317
    %362 = vmatprep.subr.bf16.mxu0 0
    %363 = vmatpush1.bf16.msra.mxu0 %v318
    %364 = vmatprep.subr.bf16.mxu0 0
    %365 = vmatpush1.bf16.msra.mxu0 %v319
    %366 = vmatprep.subr.bf16.mxu0 0
    %367 = vmatpush1.bf16.msra.mxu0 %v320
    %368 = vmatprep.subr.bf16.mxu0 0
    %369 = vmatpush1.bf16.msra.mxu0 %v321
    %370 = vmatprep.mubr.bf16.mxu0 %v202
    %371 = vmatmul.mubr.bf16.gmra.mrb[0].mxu0 %v201
    %v372 = vpop.f32.mrb[0].mxu0
    %v373 = vadd.f32 %v240, %v372
    %v374 = vpop.f32.mrb[0].mxu0
    %v375 = vpop.f32.mrb[0].mxu0
    %v376 = vpop.f32.mrb[0].mxu0
    %377 = vdwg.mxu0
    %v378 = vld [vmem:[%s7] sm:$0x1]
    %v379 = vld [vmem:[%s8] sm:$0x1]
    %380 = vadd.xlane.f32.xlu0 %v373
    %v381 = vpop.xlane.xlu0 %380
    %v382 = vrcp.pop 128.0
    %v383 = vmul.f32 %v381, %v382
    %v384 = vmul.f32 %v373, %v373
    %385 = vadd.xlane.f32.xlu0 %v384
    %v386 = vpop.xlane.xlu0 %385
    %v387 = vmul.f32 %v386, %v382
    %v388 = vmul.f32 %v383, %v383
    %v389 = vsub.f32 %v387, %v388
    %v390 = vadd.f32 %v389, 1e-05
    %v391 = vrsqrt.pop %v390
    %v392 = vsub.f32 %v373, %v383
    %v393 = vmul.f32 %v392, %v391
    %v395 = vlaneseq
    %v396 = vshrl.u32 %v395, 7
    %v397 = vsub.s32 0, %v396
    %v398 = vrot.slane %v378, %v397
    %v400 = vmul.f32 %v393, %v398
    %v402 = vlaneseq
    %v403 = vshrl.u32 %v402, 7
    %v404 = vsub.s32 0, %v403
    %v405 = vrot.slane %v379, %v404
    %v407 = vadd.f32 %v400, %v405
    %v408 = vmax.f32 %v407, 0.0
    %v409 = vpack.c.bf16 %v408, %v408
    %v410 = vld [vmem:[%s9] sm:$0x1]
    %v411 = vld [vmem:[#allocation2] sm:$0x1]
    %413 = vset.pattern.permute.xlu0 0
    %414 = vperm.xlu0 %413, %v411
    %v415 = vpop.permute.xlu0 %414
    %v417 = vlaneseq
    %v418 = vshrl.u32 %v417, 7
    %v419 = vsub.s32 0, %v418
    %v420 = vrot.slane %v415, %v419
    %421 = vmatprep.subr.bf16.mxu0 0
    %422 = vmatpush1.bf16.xpose.msra.mxu0 %v409
    %423 = vmatprep.subr.bf16.mxu0 0
    %424 = vmatpush1.bf16.xpose.msra.mxu0 0
    %425 = vmatprep.subr.bf16.mxu0 0
    %426 = vmatpush1.bf16.xpose.msra.mxu0 0
    %427 = vmatprep.subr.bf16.mxu0 0
    %428 = vmatpush1.bf16.xpose.msra.mxu0 0
    %429 = vmatprep.subr.bf16.mxu0 0
    %430 = vmatpush1.bf16.xpose.msra.mxu0 0
    %431 = vmatprep.subr.bf16.mxu0 0
    %432 = vmatpush1.bf16.xpose.msra.mxu0 0
    %433 = vmatprep.subr.bf16.mxu0 0
    %434 = vmatpush1.bf16.xpose.msra.mxu0 0
    %435 = vmatprep.subr.bf16.mxu0 0
    %436 = vmatpush1.bf16.xpose.msra.mxu0 0
    %437 = vmatprep.subr.bf16.mxu0 0
    %438 = vmatpush1.bf16.xpose.msra.mxu0 0
    %439 = vmatprep.subr.bf16.mxu0 0
    %440 = vmatpush1.bf16.xpose.msra.mxu0 0
    %441 = vmatprep.subr.bf16.mxu0 0
    %442 = vmatpush1.bf16.xpose.msra.mxu0 0
    %443 = vmatprep.subr.bf16.mxu0 0
    %444 = vmatpush1.bf16.xpose.msra.mxu0 0
    %445 = vmatprep.subr.bf16.mxu0 0
    %446 = vmatpush1.bf16.xpose.msra.mxu0 0
    %447 = vmatprep.subr.bf16.mxu0 0
    %448 = vmatpush1.bf16.xpose.msra.mxu0 0
    %449 = vmatprep.subr.bf16.mxu0 0
    %450 = vmatpush1.bf16.xpose.msra.mxu0 0
    %451 = vmatprep.subr.bf16.mxu0 0
    %452 = vmatpush1.bf16.xpose.msra.mxu0 0
    %453 = vmatprep.mubr.bf16.mxu0 0
    %454 = vmatmul.mubr.bf16.gmra.mrb[0].mxu0 %v410
    %v455 = vpop.f32.mrb[0].mxu0
    %v456 = vadd.f32 %v420, %v455
    %v457 = vpop.f32.mrb[0].mxu0
    %v458 = vpop.f32.mrb[0].mxu0
    %v459 = vpop.f32.mrb[0].mxu0
    %460 = vdwg.mxu0
    %vm461 = vcmask 57344
    %462 = vst.msk [vmem:[#allocation9] sm:$0x1] %vm461, %v456
    // Predicated region
    $region58: #{tpu_custom_call.1} parent=1 // pred_check
      _
    $region59: #{tpu_custom_call.1} parent=1 // pred_check_branch
      %464 = sbr.rel (0) target = $region61
    $region60: #{tpu_custom_call.1} parent=1 // pred_region
      %s466 = ssub.s32 16, 16
      %467 = vsyncadd [#allocation5], %s466
      %s469 = sshll.u32 [#allocation9], 4
      %s470 = int_to_ptr.vmem [resolvable:$true] %s469
      %472 = dma.vmem_to_hbm [thread:$0]  %s470, 16, %s11, [#allocation5]
    $region61: #{tpu_custom_call.1} parent=1 // pred_fallthru
      _
    // Predicated region
    $region62: #{tpu_custom_call.1} parent=1 // pred_check
      _
    $region63: #{tpu_custom_call.1} parent=1 // pred_check_branch
      %474 = sbr.rel (0) target = $region65
    $region64: #{tpu_custom_call.1} parent=1 // pred_region
      %475 = dma.done [#allocation5], 16
    $region65: #{tpu_custom_call.1} parent=1 // pred_fallthru
      _
    %476 = vsyncpa [#allocation4], 1
    %477 = vsyncpa [#allocation7], 1
    %478 = vsyncpa [#allocation5], 1

</llo_original>
